<compile_context>
chip_gen: v7x
topology: tpu7x:2x2x1
jax: 0.10.0
libtpu: 0.0.40
codegen_flags: <defaults>
</compile_context>

<pallas_src>
import functools

import jax
import jax.numpy as jnp
from jax import lax
from jax.experimental import pallas as pl
from jax.experimental.pallas import tpu as pltpu


def _cdiv(a, b):
    return -(-a // b)


def _round_up(a, b):
    return _cdiv(a, b) * b


def _vmem_capacity_bytes():
    try:
        return int(pltpu.get_tpu_info().vmem_capacity_bytes)
    except Exception:
        return 64 * 1024 * 1024      # conservative (v7x-sized) fallback


def _ce_kernel(logits_ref, tgt_ref, out_ref, *, n_rows, inner, chunk_v):
    """Shifted cross-entropy over one (tile_m, V) row tile.

    Streams the vocab axis in `chunk_v`-lane chunks with an online
    (running-max, rescaled-sum) logsumexp and a fused target-logit gather, then
    adds the masked per-row loss sum into this half's resident (1, 8, 128)
    accumulator block.
    """
    tile_m, V = logits_ref.shape
    c = pl.program_id(0)             # parallel half (v7x megacore)
    i = pl.program_id(1)             # row block within the half

    @pl.when(i == 0)
    def _():
        out_ref[...] = jnp.zeros_like(out_ref)

    t = tgt_ref[...]                 # (tile_m, 1) int32, -1 = dropped position

    n_full = V // chunk_v
    rem = V - n_full * chunk_v
    f32_min = jnp.float32(jnp.finfo(jnp.float32).min)

    def chunk_step(off, width, col, carry):
        m_run, s_run, g_run = carry
        x_nat = logits_ref[:, pl.ds(off, width)]          # native-dtype chunk
        # Row max: exact in bf16 (2 elem per VALU op on bf16-capable VPUs).
        m_k = jnp.max(x_nat, axis=-1, keepdims=True).astype(jnp.float32)
        m_new = jnp.maximum(m_run, m_k)
        x = x_nat.astype(jnp.float32)                     # per-chunk upcast only
        s_run = s_run * jnp.exp(m_run - m_new) + jnp.sum(
            jnp.exp(x - m_new), axis=-1, keepdims=True)
        # Fused target-logit gather: at most one hit per row, so the
        # native-dtype select + lane-sum is exact.
        hit = (col + off) == t
        g_run = g_run + jnp.sum(
            jnp.where(hit, x_nat, 0), axis=-1, keepdims=True
        ).astype(jnp.float32)
        return m_new, s_run, g_run

    carry = (jnp.full((tile_m, 1), f32_min, jnp.float32),
             jnp.zeros((tile_m, 1), jnp.float32),
             jnp.zeros((tile_m, 1), jnp.float32))

    col_main = lax.broadcasted_iota(jnp.int32, (1, chunk_v), 1)

    def body(k, carry):
        off = k * chunk_v
        if chunk_v % 128 == 0:
            off = pl.multiple_of(off, 128)
        return chunk_step(off, chunk_v, col_main, carry)

    carry = lax.fori_loop(0, n_full, body, carry, unroll=(n_full <= 8))

    if rem:                          # static ragged-vocab tail chunk
        col_tail = lax.broadcasted_iota(jnp.int32, (1, rem), 1)
        carry = chunk_step(n_full * chunk_v, rem, col_tail, carry)

    m_run, s_run, g_run = carry
    loss_rows = m_run + jnp.log(s_run) - g_run            # (tile_m, 1)

    # Mask rows past the logical end (ragged / clamped duplicate blocks) and
    # rows whose target is the -1 sentinel (the dropped last position).
    blk = c * inner + i
    row = lax.broadcasted_iota(jnp.int32, (tile_m, 1), 0) + blk * tile_m
    valid = (row < n_rows) & (t >= 0)
    loss_rows = jnp.where(valid, loss_rows, 0.0)

    out_ref[...] = out_ref[...] + jnp.sum(loss_rows)


def _plan_tiles(n_rows, V, itemsize, mult, cap):
    """Pick tile_m and the (P, inner) grid from the per-core VMEM capacity."""
    # Double-buffered logits-tile budget: ~24 MiB on 64-MiB parts (v7x),
    # up to 48 MiB on 128-MiB parts (v5e / v6e).  Streaming keeps other
    # in-kernel temps chunk-sized, so this dominates VMEM usage.
    logits_budget = min(48 * 1024 * 1024,
                        max(8 * 1024 * 1024, cap // 2 - 8 * 1024 * 1024))
    tile_m = logits_budget // (2 * V * itemsize)
    tile_m = max(mult, (tile_m // mult) * mult)
    tile_m = min(tile_m, 4096)
    tile_m = min(tile_m, _round_up(n_rows, mult))
    n_blocks = _cdiv(n_rows, tile_m)
    if n_blocks >= 2:
        p, inner = 2, _cdiv(n_blocks, 2)
        # Re-balance tile_m so the (p, inner) grid covers all rows with no
        # clamped duplicate block (saves one wasted tile of HBM traffic on
        # single-TC v5e / v6e when the block count would be odd).
        tile_bal = _round_up(_cdiv(n_rows, p * inner), mult)
        if _cdiv(n_rows, tile_bal) == p * inner:
            tile_m, n_blocks = tile_bal, p * inner
    else:
        p, inner = 1, 1
    return tile_m, p, inner, n_blocks


def gpt_loss(logits, idx, *, chunks=1, tile_m=None):
    """Pallas equivalent of GPTLoss.forward.

    logits: (B, T, V) float; idx: (B, T) int.  Returns the scalar f32
    mean shifted cross-entropy divided by `chunks`.
    """
    B, T, V = logits.shape
    n_rows = B * T
    n_valid = B * (T - 1)

    # Free, contiguous reshape of the dominant tensor -- no HBM copy.
    flat_logits = logits.reshape(n_rows, V)

    # Tiny shifted-target column: tgt[b*T + t] = idx[b, t+1], -1 for t = T-1.
    tgt = jnp.concatenate(
        [idx[:, 1:].astype(jnp.int32), jnp.full((B, 1), -1, jnp.int32)], axis=1
    ).reshape(n_rows, 1)

    itemsize = jnp.dtype(logits.dtype).itemsize
    mult = 8 if itemsize >= 4 else 32 // itemsize        # f32 -> 8, bf16 -> 16
    cap = _vmem_capacity_bytes()

    if tile_m is None:
        tile_m, p, inner, n_blocks = _plan_tiles(n_rows, V, itemsize, mult, cap)
    else:
        tile_m = _round_up(tile_m, mult)
        n_blocks = _cdiv(n_rows, tile_m)
        p = 2 if n_blocks >= 2 else 1
        inner = _cdiv(n_blocks, p)

    chunk_v = V if V <= 512 else 512
    last_blk = n_blocks - 1

    def row_map(c, i):
        # Clamp so a duplicate block slot of the second half never DMAs out of
        # bounds; its rows are masked in-kernel via the logical row index.
        return (jnp.minimum(c * inner + i, last_blk), 0)

    kernel = functools.partial(_ce_kernel, n_rows=n_rows, inner=inner,
                               chunk_v=chunk_v)

    vmem_limit = int(max(32 * 1024 * 1024,
                         min(cap - 16 * 1024 * 1024, 112 * 1024 * 1024)))

    out = pl.pallas_call(
        kernel,
        out_shape=jax.ShapeDtypeStruct((p, 8, 128), jnp.float32),
        grid=(p, inner),
        in_specs=[
            pl.BlockSpec((tile_m, V), row_map),
            pl.BlockSpec((tile_m, 1), row_map),
        ],
        # One resident (1, 8, 128) accumulator block per parallel half.
        out_specs=pl.BlockSpec((1, 8, 128), lambda c, i: (c, 0, 0)),
        compiler_params=pltpu.CompilerParams(
            dimension_semantics=("parallel", "arbitrary"),
            vmem_limit_bytes=vmem_limit,
        ),
    )(flat_logits, tgt)

    total = jnp.sum(out[:, 0, 0])                         # one partial per half
    return total / (jnp.float32(n_valid) * jnp.float32(chunks))


def _reference_loss(logits, idx, chunks=1):
    V = logits.shape[2]
    x = logits[:, :-1, :].reshape(-1, V).astype(jnp.float32)
    t = idx[:, 1:].reshape(-1)
    logp = jax.nn.log_softmax(x, axis=-1)
    nll = -jnp.take_along_axis(logp, t[:, None], axis=-1)[:, 0]
    return jnp.mean(nll) / chunks


if __name__ == "__main__":
    key = jax.random.PRNGKey(0)
    k1, k2, k3, k4, k5, k6 = jax.random.split(key, 6)

    # 1) Small GPT-like shapes, f32, single (ragged) row block.
    B, T, V = 2, 9, 128
    logits = jax.random.normal(k1, (B, T, V), dtype=jnp.float32)
    idx = jax.random.randint(k2, (B, T), 0, V, dtype=jnp.int32)
    loss = jax.block_until_ready(gpt_loss(logits, idx, chunks=1))
    ref = _reference_loss(logits, idx, chunks=1)
    assert jnp.allclose(loss, ref, rtol=1e-5, atol=1e-5), (loss, ref)

    # 2) bf16 logits, V-chunking with a ragged vocab tail, odd block count ->
    #    clamped duplicate block on the (2, inner) split.
    B, T, V = 2, 33, 1152
    logits = jax.random.normal(k3, (B, T, V), dtype=jnp.bfloat16)
    idx = jax.random.randint(k4, (B, T), 0, V, dtype=jnp.int32)
    loss = jax.block_until_ready(gpt_loss(logits, idx, tile_m=16))
    ref = _reference_loss(logits, idx)
    assert jnp.allclose(loss, ref, rtol=1e-4, atol=1e-4), (loss, ref)

    # 3) f32, many small row blocks, odd block count -> clamped duplicate path.
    B, T, V = 8, 9, 128
    logits = jax.random.normal(k5, (B, T, V), dtype=jnp.float32)
    idx = jax.random.randint(k6, (B, T), 0, V, dtype=jnp.int32)
    loss = jax.block_until_ready(gpt_loss(logits, idx, tile_m=8))
    ref = _reference_loss(logits, idx)
    assert jnp.allclose(loss, ref, rtol=1e-5, atol=1e-5), (loss, ref)

    print("KERNEL_OK")
</pallas_src>

<mosaic_0001>
module attributes {stable_mosaic.version = 11 : i64} {
  func.func @_ce_kernel(%arg0: i32, %arg1: i32, %arg2: memref<24x128xf32, #tpu.memory_space<vmem>>, %arg3: memref<24x1xi32, #tpu.memory_space<vmem>>, %arg4: memref<1x8x128xf32, #tpu.memory_space<vmem>>) attributes {dimension_semantics = [#tpu.dimension_semantics<parallel>, #tpu.dimension_semantics<arbitrary>], iteration_bounds = array<i64: 1, 1>, scalar_prefetch = 0 : i64, scratch_operands = 0 : i64, tpu.core_type = #tpu.core_type<tc>, window_params = [{transform_indices = @transform_0, window_bounds = array<i64: 24, 128>}, {transform_indices = @transform_1, window_bounds = array<i64: 24, 1>}, {transform_indices = @transform_2, window_bounds = array<i64: 1, 8, 128>}]} {
    %c0_i32 = arith.constant 0 : i32
    %0 = arith.cmpi eq, %arg1, %c0_i32 : i32
    %1 = arith.extui %0 : i1 to i32
    %c0_i32_0 = arith.constant 0 : i32
    %2 = arith.cmpi ne, %1, %c0_i32_0 : i32
    scf.if %2 {
      %cst_20 = arith.constant 0.000000e+00 : f32
      %59 = vector.broadcast %cst_20 : f32 to vector<1x8x128xf32>
      %c0_21 = arith.constant 0 : index
      %c0_22 = arith.constant 0 : index
      %c0_23 = arith.constant 0 : index
      %60 = vector.load %arg4[%c0_21, %c0_22, %c0_23] : memref<1x8x128xf32, #tpu.memory_space<vmem>>, vector<1x8x128xf32>
      tpu.vector_store %arg4[%c0_21, %c0_22, %c0_23], %59 {strides = array<i32>} : memref<1x8x128xf32, #tpu.memory_space<vmem>>, vector<1x8x128xf32>,
    } else {
    }
    %c0 = arith.constant 0 : index
    %c0_1 = arith.constant 0 : index
    %3 = vector.load %arg3[%c0, %c0_1] : memref<24x1xi32, #tpu.memory_space<vmem>>, vector<24x1xi32>
    %cst = arith.constant -3.40282347E+38 : f32
    %4 = vector.broadcast %cst : f32 to vector<24x1xf32>
    %cst_2 = arith.constant 0.000000e+00 : f32
    %5 = vector.broadcast %cst_2 : f32 to vector<24x1xf32>
    %cst_3 = arith.constant 0.000000e+00 : f32
    %6 = vector.broadcast %cst_3 : f32 to vector<24x1xf32>
    %7 = tpu.iota {dimensions = array<i32: 1>} : vector<1x128xi32>
    %c0_i32_4 = arith.constant 0 : i32
    %c128_i32 = arith.constant 128 : i32
    %8 = arith.muli %c0_i32_4, %c128_i32 : i32
    %9 = tpu.assume_multiple %8, 128 : i32
    %c0_5 = arith.constant 0 : index
    %10 = arith.index_cast %9 : i32 to index
    %11 = vector.load %arg2[%c0_5, %10] : memref<24x128xf32, #tpu.memory_space<vmem>>, vector<24x128xf32>
    %cst_6 = arith.constant dense<0xFF800000> : vector<24xf32>
    %12 = vector.multi_reduction <maximumf>, %11, %cst_6 [1] : vector<24x128xf32> to vector<24xf32>
    %13 = vector.shape_cast %12 : vector<24xf32> to vector<24x1xf32>
    %14 = arith.maximumf %4, %13 : vector<24x1xf32>
    %15 = arith.subf %4, %14 : vector<24x1xf32>
    %16 = math.exp %15 : vector<24x1xf32>
    %17 = arith.mulf %5, %16 : vector<24x1xf32>
    %18 = vector.broadcast %14 : vector<24x1xf32> to vector<24x128xf32>
    %19 = arith.subf %11, %18 : vector<24x128xf32>
    %20 = math.exp %19 : vector<24x128xf32>
    %cst_7 = arith.constant dense<0.000000e+00> : vector<24xf32>
    %21 = vector.multi_reduction <add>, %20, %cst_7 [1] : vector<24x128xf32> to vector<24xf32>
    %22 = vector.shape_cast %21 : vector<24xf32> to vector<24x1xf32>
    %23 = arith.addf %17, %22 : vector<24x1xf32>
    %24 = vector.broadcast %9 : i32 to vector<1x128xi32>
    %25 = arith.addi %7, %24 : vector<1x128xi32>
    %26 = vector.broadcast %25 : vector<1x128xi32> to vector<24x128xi32>
    %27 = vector.broadcast %3 : vector<24x1xi32> to vector<24x128xi32>
    %28 = arith.cmpi eq, %26, %27 : vector<24x128xi32>
    %c0_i32_8 = arith.constant 0 : i32
    %29 = arith.sitofp %c0_i32_8 : i32 to f32
    %30 = vector.broadcast %29 : f32 to vector<24x128xf32>
    %31 = arith.select %28, %11, %30 : vector<24x128xi1>, vector<24x128xf32>
    %cst_9 = arith.constant dense<0.000000e+00> : vector<24xf32>
    %32 = vector.multi_reduction <add>, %31, %cst_9 [1] : vector<24x128xf32> to vector<24xf32>
    %33 = vector.shape_cast %32 : vector<24xf32> to vector<24x1xf32>
    %34 = arith.addf %6, %33 : vector<24x1xf32>
    %c1_i32 = arith.constant 1 : i32
    %35 = math.log %23 : vector<24x1xf32>
    %36 = arith.addf %14, %35 : vector<24x1xf32>
    %37 = arith.subf %36, %34 : vector<24x1xf32>
    %c1_i32_10 = arith.constant 1 : i32
    %38 = arith.muli %arg0, %c1_i32_10 : i32
    %39 = arith.addi %38, %arg1 : i32
    %40 = tpu.iota {dimensions = array<i32: 0>} : vector<24x1xi32>
    %c24_i32 = arith.constant 24 : i32
    %41 = arith.muli %39, %c24_i32 : i32
    %42 = vector.broadcast %41 : i32 to vector<24x1xi32>
    %43 = arith.addi %40, %42 : vector<24x1xi32>
    %c18_i32 = arith.constant 18 : i32
    %44 = vector.broadcast %c18_i32 : i32 to vector<24x1xi32>
    %45 = arith.cmpi slt, %43, %44 : vector<24x1xi32>
    %c0_i32_11 = arith.constant 0 : i32
    %46 = vector.broadcast %c0_i32_11 : i32 to vector<24x1xi32>
    %47 = arith.cmpi sge, %3, %46 : vector<24x1xi32>
    %48 = arith.andi %45, %47 : vector<24x1xi1>
    %cst_12 = arith.constant 0.000000e+00 : f32
    %49 = vector.broadcast %cst_12 : f32 to vector<24x1xf32>
    %50 = arith.select %48, %37, %49 : vector<24x1xi1>, vector<24x1xf32>
    %c0_13 = arith.constant 0 : index
    %c0_14 = arith.constant 0 : index
    %c0_15 = arith.constant 0 : index
    %51 = vector.load %arg4[%c0_13, %c0_14, %c0_15] : memref<1x8x128xf32, #tpu.memory_space<vmem>>, vector<1x8x128xf32>
    %52 = vector.shape_cast %50 : vector<24x1xf32> to vector<1x24x1xf32>
    %cst_16 = arith.constant dense<0.000000e+00> : vector<1xf32>
    %53 = vector.multi_reduction <add>, %52, %cst_16 [1, 2] : vector<1x24x1xf32> to vector<1xf32>
    %54 = vector.shape_cast %53 : vector<1xf32> to vector<1x1x1xf32>
    %55 = vector.extract %54[0, 0, 0] : f32 from vector<1x1x1xf32>
    %56 = vector.broadcast %55 : f32 to vector<1x8x128xf32>
    %57 = arith.addf %51, %56 : vector<1x8x128xf32>
    %c0_17 = arith.constant 0 : index
    %c0_18 = arith.constant 0 : index
    %c0_19 = arith.constant 0 : index
    %58 = vector.load %arg4[%c0_17, %c0_18, %c0_19] : memref<1x8x128xf32, #tpu.memory_space<vmem>>, vector<1x8x128xf32>
    tpu.vector_store %arg4[%c0_17, %c0_18, %c0_19], %57 {strides = array<i32>} : memref<1x8x128xf32, #tpu.memory_space<vmem>>, vector<1x8x128xf32>,
    return
  }
  func.func @transform_0(%arg0: i32, %arg1: i32) -> (i32, i32) {
    %c1_i32 = arith.constant 1 : i32
    %0 = arith.muli %arg0, %c1_i32 : i32
    %1 = arith.addi %0, %arg1 : i32
    %c0_i32 = arith.constant 0 : i32
    %2 = arith.minsi %1, %c0_i32 : i32
    %c0_i32_0 = arith.constant 0 : i32
    %c0_i32_1 = arith.constant 0 : i32
    return %2, %c0_i32_0 : i32, i32
  }
  func.func @transform_1(%arg0: i32, %arg1: i32) -> (i32, i32) {
    %c1_i32 = arith.constant 1 : i32
    %0 = arith.muli %arg0, %c1_i32 : i32
    %1 = arith.addi %0, %arg1 : i32
    %c0_i32 = arith.constant 0 : i32
    %2 = arith.minsi %1, %c0_i32 : i32
    %c0_i32_0 = arith.constant 0 : i32
    %c0_i32_1 = arith.constant 0 : i32
    return %2, %c0_i32_0 : i32, i32
  }
  func.func @transform_2(%arg0: i32, %arg1: i32) -> (i32, i32, i32) {
    %c0_i32 = arith.constant 0 : i32
    %c0_i32_0 = arith.constant 0 : i32
    %c0_i32_1 = arith.constant 0 : i32
    return %arg0, %c0_i32, %c0_i32_0 : i32, i32, i32
  }
}

</mosaic_0001>

<llo_original>
// kernel: tpu_custom_call.1
$region0: #{tpu_custom_call.1}
  #allocation0 [shape = 'u32[]', space=smem, size = 0x4, offset = 0x4, fixed_abs, tag = 'smem constant byte address 0x4 - core index']
  #allocation1 [shape = 'u32[144,128]{1,0:T(1,128)}', space=vmem, size = 0x12000, scoped, tag = 'internal scratch']
  %s0 = inlined_call_operand.vmem [shape: f32[18,128], index: 0, kind: input, shape index: {}]
  %s1 = inlined_call_operand.vmem [shape: s32[18,1], index: 1, kind: input, shape index: {}]
  %s2 = inlined_call_operand.hbm [shape: f32[1,8,128], index: 2, kind: output, shape index: {}]
  %s3 = sld [smem:[#allocation0]]
  $region22: #{tpu_custom_call.1} parent=0
    _
  %s5 = ssub.s32 1, %s3
  %s6 = scalar_select 0, %s5, %s3
  $region1: #{tpu_custom_call.1} parent=0
    #allocation2 [shape = 'u8[4096]{0}', space=vmem, size = 0x1000, scoped, tag = 'output window, operand 0, single buffered']
    #allocation3 [shape = 's32[1]{0}', space=sflag, size = 0x4, scoped, tag = 'scoped memory for tpu_custom_call.1']
    %7 = vsyncpa [#allocation3], 0
    // Predicated region
    $region2: #{tpu_custom_call.1} parent=1 // pred_check
      _
    $region3: #{tpu_custom_call.1} parent=1 // pred_check_branch
      %9 = sbr.rel (0) target = $region5
    $region4: #{tpu_custom_call.1} parent=1 // pred_region
      %s10 = sadd.s32 0, 0
      %p11 = scmp.lt.s32.totalorder %s10, 0
      %s12 = scalar_select %p11, %s10, 0
      %s13 = smul.u32 3, %s12
      %p14 = scmp.lt.s32.totalorder %s13, 2
      %s15 = scalar_select %p14, %s13, 2
      %s16 = smul.addr %s15, 8
      %s17 = scalar_lea.vmem %s0, %s16
      %s18 = sadd.s32 0, 0
      %p19 = scmp.lt.s32.totalorder %s18, 0
      %s20 = scalar_select %p19, %s18, 0
      %s21 = smul.u32 3, %s20
    $region5: #{tpu_custom_call.1} parent=1 // pred_fallthru
      _
    // Predicated region
    $region6: #{tpu_custom_call.1} parent=1 // pred_check
      _
    $region7: #{tpu_custom_call.1} parent=1 // pred_check_branch
      %23 = sbr.rel (0) target = $region9
    $region8: #{tpu_custom_call.1} parent=1 // pred_region
      %s24 = sadd.s32 0, 0
      %p25 = scmp.lt.s32.totalorder %s24, 0
      %s26 = scalar_select %p25, %s24, 0
      %s27 = smul.u32 3, %s26
      %p28 = scmp.lt.s32.totalorder %s27, 2
      %s29 = scalar_select %p28, %s27, 2
      %s30 = smul.addr %s29, 8
      %s31 = scalar_lea.vmem %s1, %s30
      %s32 = sadd.s32 0, 0
      %p33 = scmp.lt.s32.totalorder %s32, 0
      %s34 = scalar_select %p33, %s32, 0
      %s35 = smul.u32 3, %s34
    $region9: #{tpu_custom_call.1} parent=1 // pred_fallthru
      _
    %s36 = sadd.s32 0, 0
    %p37 = scmp.lt.s32.totalorder %s36, 0
    %s38 = scalar_select %p37, %s36, 0
    %s39 = smul.u32 3, %s38
    %p40 = scmp.lt.s32.totalorder %s39, 2
    %s41 = scalar_select %p40, %s39, 2
    %s42 = smul.addr %s41, 8
    %s43 = scalar_lea.vmem %s0, %s42
    %s44 = sadd.s32 0, 0
    %p45 = scmp.lt.s32.totalorder %s44, 0
    %s46 = scalar_select %p45, %s44, 0
    %s47 = smul.u32 3, %s46
    %p48 = scmp.lt.s32.totalorder %s47, 2
    %s49 = scalar_select %p48, %s47, 2
    %s50 = smul.addr %s49, 8
    %s51 = scalar_lea.vmem %s1, %s50
    %s52 = sadd.s32 0, 0
    %p53 = scmp.lt.s32.totalorder %s52, 0
    %s54 = scalar_select %p53, %s52, 0
    %s55 = smul.u32 3, %s54
    %p56 = scmp.lt.s32.totalorder %s55, 2
    %s57 = scalar_select %p56, %s55, 2
    %s58 = smul.addr %s57, 8
    %s59 = scalar_lea.vmem %s0, %s58
    %s60 = sadd.s32 0, 0
    %p61 = scmp.lt.s32.totalorder %s60, 0
    %s62 = scalar_select %p61, %s60, 0
    %s63 = smul.u32 3, %s62
    %s64 = sadd.s32 0, 0
    %p65 = scmp.lt.s32.totalorder %s64, 0
    %s66 = scalar_select %p65, %s64, 0
    %s67 = smul.u32 3, %s66
    %p68 = scmp.lt.s32.totalorder %s67, 2
    %s69 = scalar_select %p68, %s67, 2
    %s70 = smul.addr %s69, 8
    %s71 = scalar_lea.vmem %s1, %s70
    %s72 = sadd.s32 0, 0
    %p73 = scmp.lt.s32.totalorder %s72, 0
    %s74 = scalar_select %p73, %s72, 0
    %s75 = smul.u32 3, %s74
    %p76 = scmp.eq.s32.totalorder 0, 0
    // Predicated region
    $region10: #{tpu_custom_call.1} parent=1 // pred_check
      %p77 = pneg %p76
    $region11: #{tpu_custom_call.1} parent=1 // pred_check_branch
      %79 = sbr.rel (%p77) target = $region13
    $region12: #{tpu_custom_call.1} parent=1 // pred_region
      %80 = vst [vmem:[#allocation2] sm:$0xff] 0.0
    $region13: #{tpu_custom_call.1} parent=1 // pred_fallthru
      _
    %v81 = vld [vmem:[%s71] sm:$0xff]
    %v82 = vld [vmem:[%s71 + $0x8] sm:$0xff]
    %v83 = vld [vmem:[%s71 + $0x10] sm:$0xff]
    %v84 = vlaneseq
    %v85 = vand.u32 %v84, 127
    %v86 = vld [vmem:[%s59] sm:$0xff]
    %v87 = vld [vmem:[%s59 + $0x8] sm:$0xff]
    %v88 = vld [vmem:[%s59 + $0x10] sm:$0xff]
    %89 = vmax.xlane.f32.xlu0 %v86
    %v90 = vpop.xlane.xlu0 %89
    %91 = vmax.xlane.f32.xlu0 %v87
    %v92 = vpop.xlane.xlu0 %91
    %93 = vmax.xlane.f32.xlu0 %v88
    %v94 = vpop.xlane.xlu0 %93
    %v95 = vmax.f32 %v90, -3.4028235e+38
    %v96 = vmax.f32 %v92, -3.4028235e+38
    %v97 = vmax.f32 %v94, -3.4028235e+38
    %v98 = vsub.f32 -3.4028235e+38, %v95
    %v99 = vsub.f32 -3.4028235e+38, %v96
    %v100 = vsub.f32 -3.4028235e+38, %v97
    %v101 = vmul.f32 %v98, 1.442695
    %v102 = vpow.pop %v101
    %v103 = vmul.f32 %v99, 1.442695
    %v104 = vpow.pop %v103
    %v105 = vmul.f32 %v100, 1.442695
    %v106 = vpow.pop %v105
    %v107 = vmul.f32 %v102, 0.0
    %v108 = vmul.f32 %v104, 0.0
    %v109 = vmul.f32 %v106, 0.0
    %v110 = vsub.f32 %v86, %v95
    %v111 = vsub.f32 %v87, %v96
    %v112 = vsub.f32 %v88, %v97
    %v113 = vmul.f32 %v110, 1.442695
    %v114 = vpow.pop %v113
    %v115 = vmul.f32 %v111, 1.442695
    %v116 = vpow.pop %v115
    %v117 = vmul.f32 %v112, 1.442695
    %v118 = vpow.pop %v117
    %119 = vadd.xlane.f32.xlu0 %v114
    %v120 = vpop.xlane.xlu0 %119
    %121 = vadd.xlane.f32.xlu0 %v116
    %v122 = vpop.xlane.xlu0 %121
    %123 = vadd.xlane.f32.xlu0 %v118
    %v124 = vpop.xlane.xlu0 %123
    %v125 = vadd.f32 %v107, %v120
    %v126 = vadd.f32 %v108, %v122
    %v127 = vadd.f32 %v109, %v124
    %v128 = vstv 0
    %v129 = vadd.s32 %v85, %v128
    %130 = vset.pattern.permute.xlu0 0
    %131 = vperm.xlu0 %130, %v81
    %v132 = vpop.permute.xlu0 %131
    %133 = vset.pattern.permute.xlu0 0
    %134 = vperm.xlu0 %133, %v82
    %v135 = vpop.permute.xlu0 %134
    %136 = vset.pattern.permute.xlu0 0
    %137 = vperm.xlu0 %136, %v83
    %v138 = vpop.permute.xlu0 %137
    %vm139 = vcmp.eq.s32.totalorder %v129, %v132
    %vm140 = vcmp.eq.s32.totalorder %v129, %v135
    %vm141 = vcmp.eq.s32.totalorder %v129, %v138
    %v142 = vsel %vm139, %v86, 0.0
    %v143 = vsel %vm140, %v87, 0.0
    %v144 = vsel %vm141, %v88, 0.0
    %145 = vadd.xlane.f32.xlu0 %v142
    %v146 = vpop.xlane.xlu0 %145
    %147 = vadd.xlane.f32.xlu0 %v143
    %v148 = vpop.xlane.xlu0 %147
    %149 = vadd.xlane.f32.xlu0 %v144
    %v150 = vpop.xlane.xlu0 %149
    %v151 = vadd.f32 %v146, 0.0
    %v152 = vadd.f32 %v148, 0.0
    %v153 = vadd.f32 %v150, 0.0
    %v154 = vlog2.pop %v125
    %v155 = vmul.f32 %v154, 0.6931472
    %v156 = vlog2.pop %v126
    %v157 = vmul.f32 %v156, 0.6931472
    %v158 = vlog2.pop %v127
    %v159 = vmul.f32 %v158, 0.6931472
    %v160 = vadd.f32 %v95, %v155
    %v161 = vadd.f32 %v96, %v157
    %v162 = vadd.f32 %v97, %v159
    %v163 = vsub.f32 %v160, %v151
    %v164 = vsub.f32 %v161, %v152
    %v165 = vsub.f32 %v162, %v153
    %s166 = sadd.s32 0, 0
    %v167 = vlaneseq
    %v168 = vshrl.u32 %v167, 7
    %v169 = vadd.s32 %v168, 8
    %v170 = vadd.s32 %v168, 16
    %s171 = smul.u32 %s166, 24
    %v172 = vstv %s171
    %v173 = vadd.s32 %v168, %v172
    %v174 = vadd.s32 %v169, %v172
    %v175 = vadd.s32 %v170, %v172
    %vm176 = vcmp.lt.s32.totalorder %v173, 18
    %vm177 = vcmp.lt.s32.totalorder %v174, 18
    %vm178 = vcmp.lt.s32.totalorder %v175, 18
    %vm179 = vcmp.ge.s32.totalorder %v81, 0
    %vm180 = vcmp.ge.s32.totalorder %v82, 0
    %vm181 = vcmp.ge.s32.totalorder %v83, 0
    %vm182 = vmand %vm176, %vm179
    %vm183 = vmand %vm177, %vm180
    %vm184 = vmand %vm178, %vm181
    %v185 = vsel %vm182, %v163, 0.0
    %v186 = vsel %vm183, %v164, 0.0
    %v187 = vsel %vm184, %v165, 0.0
    %v188 = vld [vmem:[#allocation2] sm:$0xff]
    %vm189 = vcmask 7168
    %v190 = vsel %vm189, %v185, 0.0
    %v191 = vsel %vm189, %v186, 0.0
    %v192 = vadd.f32 %v190, %v191
    %v193 = vsel %vm189, %v187, 0.0
    %v194 = vadd.f32 %v192, %v193
    %195 = vadd.xlane.f32.xlu0 %v194
    %v196 = vpop.xlane.xlu0 %195
    %v197 = vrot.slane %v196, 4
    %v198 = vadd.f32 %v196, %v197
    %v199 = vrot.slane %v198, 2
    %v200 = vadd.f32 %v198, %v199
    %v201 = vrot.slane %v200, 1
    %v202 = vadd.f32 %v200, %v201
    %s203 = vtos %v202
    %v204 = vstv %s203
    %v205 = vadd.f32 %v188, %v204
    %206 = vst [vmem:[#allocation2] sm:$0xff] %v205
    // Predicated region
    $region14: #{tpu_custom_call.1} parent=1 // pred_check
      _
    $region15: #{tpu_custom_call.1} parent=1 // pred_check_branch
      %208 = sbr.rel (0) target = $region17
    $region16: #{tpu_custom_call.1} parent=1 // pred_region
      %s210 = ssub.s32 128, 128
      %211 = vsyncadd [#allocation3], %s210
      %s213 = sshll.u32 [#allocation2], 4
      %s214 = int_to_ptr.vmem [resolvable:$true] %s213
      %216 = dma.vmem_to_hbm [thread:$0]  %s214, 128, %s2, [#allocation3]
    $region17: #{tpu_custom_call.1} parent=1 // pred_fallthru
      _
    // Predicated region
    $region18: #{tpu_custom_call.1} parent=1 // pred_check
      _
    $region19: #{tpu_custom_call.1} parent=1 // pred_check_branch
      %218 = sbr.rel (0) target = $region21
    $region20: #{tpu_custom_call.1} parent=1 // pred_region
      %219 = dma.done [#allocation3], 128
    $region21: #{tpu_custom_call.1} parent=1 // pred_fallthru
      _
    %220 = vsyncpa [#allocation3], 1

</llo_original>
